<compile_context>
chip_gen: v5e
topology: v5e:2x2
jax: 0.10.0
libtpu: 0.0.40
codegen_flags: <defaults>
</compile_context>

<pallas_src>
import functools

import jax
import jax.numpy as jnp
from jax.experimental import pallas as pl
from jax.experimental.pallas import tpu as pltpu


def qa_loss_kernel(logit_type_ref, logit_sa_ref, targets_ref, out_ref, *,
                   class_weights):
    zt = logit_type_ref[...]              # (tb, C)  native dtype
    z = logit_sa_ref[...]                 # (tb, 2S) native dtype, interleaved
    tgt = targets_ref[...]                # (tb, 3)  int32

    tb = zt.shape[0]
    lab_type = tgt[:, 0:1]                # (tb, 1)
    lab_start = tgt[:, 1:2]               # (tb, 1)
    lab_end = tgt[:, 2:3]                 # (tb, 1)

    # ---- type head: CE = lse(z) - z[label] ---------------------------------
    m_t = jnp.max(zt, axis=-1, keepdims=True)
    e_t = jnp.exp((zt - m_t).astype(jnp.float32))
    lse_t = m_t.astype(jnp.float32) + jnp.log(
        jnp.sum(e_t, axis=-1, keepdims=True))
    cidx = jax.lax.broadcasted_iota(jnp.int32, zt.shape, 1)
    z_lab_t = jnp.sum(jnp.where(cidx == lab_type, zt, 0.0),
                      axis=-1, keepdims=True).astype(jnp.float32)
    ce_type = lse_t - z_lab_t             # (tb, 1)

    # Per-row class weight (compile-time unrolled; padded/out-of-range -> 0).
    w_i = jnp.zeros((tb, 1), jnp.float32)
    for k, wk in enumerate(class_weights):
        w_i = jnp.where(lab_type == k, jnp.float32(wk), w_i)

    # ---- fused start/end head over the interleaved (tb, 2S) tile -----------
    col = jax.lax.broadcasted_iota(jnp.int32, z.shape, 1)
    is_start = (col & 1) == 0
    neg_inf = jnp.asarray(-jnp.inf, dtype=z.dtype)
    m_s = jnp.max(jnp.where(is_start, z, neg_inf), axis=-1, keepdims=True)
    m_e = jnp.max(jnp.where(is_start, neg_inf, z), axis=-1, keepdims=True)
    shift = jnp.where(is_start, m_s, m_e)                  # (tb, 2S) native
    e = jnp.exp((z - shift).astype(jnp.float32))           # f32 only here
    sum_all = jnp.sum(e, axis=-1, keepdims=True)
    sum_s = jnp.sum(jnp.where(is_start, e, 0.0), axis=-1, keepdims=True)
    sum_e = sum_all - sum_s

    z_lab_s = jnp.sum(jnp.where(col == 2 * lab_start, z, 0.0),
                      axis=-1, keepdims=True).astype(jnp.float32)
    z_lab_e = jnp.sum(jnp.where(col == 2 * lab_end + 1, z, 0.0),
                      axis=-1, keepdims=True).astype(jnp.float32)

    ce_start = m_s.astype(jnp.float32) + jnp.log(sum_s) - z_lab_s   # (tb, 1)
    ce_end = m_e.astype(jnp.float32) + jnp.log(sum_e) - z_lab_e     # (tb, 1)

    mask = (lab_type == 1).astype(jnp.float32)                      # (tb, 1)

    # ---- per-block partial sums --------------------------------------------
    sum_w_ce = jnp.sum(w_i * ce_type, keepdims=True)                # (1, 1)
    sum_w = jnp.sum(w_i, keepdims=True)                             # (1, 1)
    sum_ce_sa = jnp.sum((ce_start + ce_end) * mask, keepdims=True)  # (1, 1)
    n_sa = jnp.sum(mask, keepdims=True)                             # (1, 1)

    sub = jax.lax.broadcasted_iota(jnp.int32, out_ref.shape, 1)
    out_ref[...] = (jnp.where(sub == 0, sum_w_ce, 0.0)
                    + jnp.where(sub == 1, sum_w, 0.0)
                    + jnp.where(sub == 2, sum_ce_sa, 0.0)
                    + jnp.where(sub == 3, n_sa, 0.0))


def _round_up(x, m):
    return (x + m - 1) // m * m


def basic_qa_loss(logit_sa, logit_type, targets, *,
                  sa_weight: float,
                  class_weights=(0.75, 1.0, 2.0, 2.0),
                  block_rows: int = 128):
    """logit_sa: (B, S, 2), logit_type: (B, C), targets: (B, 3) int.

    logit_sa / logit_type may be f32 or bf16 (kernel upcasts per block at the
    exp step).
    """
    B, S, two = logit_sa.shape
    assert two == 2
    C = logit_type.shape[1]
    targets = targets.astype(jnp.int32)

    # Batch tiling (tb multiple of 8 for (8,128) sublane alignment).
    tb = _round_up(min(block_rows, _round_up(B, 8)), 8)
    B_pad = _round_up(B, tb)
    if B_pad != B:
        pad = B_pad - B
        # Padded rows: zero logits, label -1 -> weight 0, mask 0 -> no effect.
        logit_sa = jnp.pad(logit_sa, ((0, pad), (0, 0), (0, 0)))
        logit_type = jnp.pad(logit_type, ((0, pad), (0, 0)))
        targets = jnp.pad(targets, ((0, pad), (0, 0)), constant_values=-1)
    nb = B_pad // tb

    # Free, contiguous view: (B, S, 2) -> (B, 2S) interleaved [s0,e0,s1,e1,...]
    logit_sa2 = logit_sa.reshape(B_pad, 2 * S)

    itemsize_sa = jnp.dtype(logit_sa2.dtype).itemsize
    itemsize_t = jnp.dtype(logit_type.dtype).itemsize
    in_block_bytes = tb * (2 * S * itemsize_sa + C * itemsize_t + 3 * 4)
    f32_temp_bytes = 4 * tb * 2 * S * 4
    vmem_limit = int(min(32 * 1024 * 1024,
                         max(8 * 1024 * 1024,
                             2 * in_block_bytes + f32_temp_bytes + (2 << 20))))

    cost = pl.CostEstimate(
        flops=int(10 * B_pad * (2 * S + C)),
        transcendentals=int(B_pad * (2 * S + C)),
        bytes_accessed=int(B_pad * (2 * S * itemsize_sa + C * itemsize_t + 12)
                           + nb * 8 * 128 * 4),
    )

    partials = pl.pallas_call(
        functools.partial(
            qa_loss_kernel,
            class_weights=tuple(float(w) for w in class_weights)),
        out_shape=jax.ShapeDtypeStruct((nb, 8, 128), jnp.float32),
        grid=(nb,),
        in_specs=[
            pl.BlockSpec((tb, C), lambda i: (i, 0)),
            pl.BlockSpec((tb, 2 * S), lambda i: (i, 0)),
            pl.BlockSpec((tb, 3), lambda i: (i, 0)),
        ],
        out_specs=pl.BlockSpec((1, 8, 128), lambda i: (i, 0, 0)),
        compiler_params=pltpu.CompilerParams(
            dimension_semantics=("parallel",),
            vmem_limit_bytes=vmem_limit),
        cost_estimate=cost,
    )(logit_type, logit_sa2, targets)

    # Tiny final combine on the (nb, 4) partials (all lanes carry same value).
    tot = jnp.sum(partials[:, :4, 0], axis=0)
    sum_w_ce, sum_w, sum_ce_sa, n_sa = tot[0], tot[1], tot[2], tot[3]
    type_loss = sum_w_ce / sum_w
    sa_loss = sum_ce_sa / jnp.maximum(n_sa, 1.0)
    sa_w = float(sa_weight)
    combined = (type_loss + sa_w * sa_loss) / (1.0 + sa_w)
    return jnp.where(n_sa > 0, combined, type_loss)


def _reference(logit_sa, logit_type, targets, *, sa_weight,
               class_weights=(0.75, 1.0, 2.0, 2.0)):
    cw = jnp.asarray(class_weights, jnp.float32)
    lab = targets[:, 0]
    logp_t = jax.nn.log_softmax(logit_type.astype(jnp.float32), axis=-1)
    nll_t = -jnp.take_along_axis(logp_t, lab[:, None], axis=-1)[:, 0]
    w = cw[lab]
    type_loss = jnp.sum(w * nll_t) / jnp.sum(w)

    mask = (lab == 1).astype(jnp.float32)
    n_sa = jnp.sum(mask)
    logp_s = jax.nn.log_softmax(logit_sa[:, :, 0].astype(jnp.float32), axis=-1)
    logp_e = jax.nn.log_softmax(logit_sa[:, :, 1].astype(jnp.float32), axis=-1)
    ce_s = -jnp.take_along_axis(logp_s, targets[:, 1][:, None], axis=-1)[:, 0]
    ce_e = -jnp.take_along_axis(logp_e, targets[:, 2][:, None], axis=-1)[:, 0]
    denom = jnp.maximum(n_sa, 1.0)
    sa_loss = (jnp.sum(ce_s * mask) + jnp.sum(ce_e * mask)) / denom
    combined = (type_loss + sa_weight * sa_loss) / (1.0 + sa_weight)
    return jnp.where(n_sa > 0, combined, type_loss)


if __name__ == "__main__":
    C = 4
    sa_weight = 0.5
    key = jax.random.PRNGKey(0)

    def make_case(k, B, S):
        k1, k2, k3, k4, k5 = jax.random.split(k, 5)
        logit_sa = jax.random.normal(k1, (B, S, 2), dtype=jnp.float32)
        logit_type = jax.random.normal(k2, (B, C), dtype=jnp.float32)
        t_type = jax.random.randint(k3, (B,), 0, C, dtype=jnp.int32)
        t_start = jax.random.randint(k4, (B,), 0, S, dtype=jnp.int32)
        t_end = jax.random.randint(k5, (B,), 0, S, dtype=jnp.int32)
        # Guarantee at least one "short answer" row so the n_sa > 0 branch hits.
        t_type = t_type.at[0].set(1)
        targets = jnp.stack([t_type, t_start, t_end], axis=1)
        return logit_sa, logit_type, targets

    ka, kb = jax.random.split(key)

    # Case 1: single block (B multiple of 8).
    logit_sa, logit_type, targets = make_case(ka, 8, 16)
    loss = jax.block_until_ready(
        basic_qa_loss(logit_sa, logit_type, targets, sa_weight=sa_weight))
    ref = _reference(logit_sa, logit_type, targets, sa_weight=sa_weight)
    assert jnp.allclose(loss, ref, rtol=1e-5, atol=1e-5), (loss, ref)

    # Case 2: ragged batch -> padding + 2 grid blocks (exercises the tiling).
    logit_sa, logit_type, targets = make_case(kb, 13, 16)
    loss2 = jax.block_until_ready(
        basic_qa_loss(logit_sa, logit_type, targets, sa_weight=sa_weight,
                      block_rows=8))
    ref2 = _reference(logit_sa, logit_type, targets, sa_weight=sa_weight)
    assert jnp.allclose(loss2, ref2, rtol=1e-5, atol=1e-5), (loss2, ref2)

    print("KERNEL_OK")
</pallas_src>

<mosaic_0001>
module attributes {stable_mosaic.version = 11 : i64} {
  func.func @qa_loss_kernel(%arg0: i32, %arg1: memref<8x4xf32, #tpu.memory_space<vmem>>, %arg2: memref<8x32xf32, #tpu.memory_space<vmem>>, %arg3: memref<8x3xi32, #tpu.memory_space<vmem>>, %arg4: memref<1x8x128xf32, #tpu.memory_space<vmem>>) attributes {dimension_semantics = [#tpu.dimension_semantics<parallel>], iteration_bounds = array<i64: 1>, scalar_prefetch = 0 : i64, scratch_operands = 0 : i64, tpu.core_type = #tpu.core_type<tc>, window_params = [{transform_indices = @transform_0, window_bounds = array<i64: 8, 4>}, {transform_indices = @transform_1, window_bounds = array<i64: 8, 32>}, {transform_indices = @transform_2, window_bounds = array<i64: 8, 3>}, {transform_indices = @transform_3, window_bounds = array<i64: 1, 8, 128>}]} {
    %c0 = arith.constant 0 : index
    %c0_0 = arith.constant 0 : index
    %0 = vector.load %arg1[%c0, %c0_0] : memref<8x4xf32, #tpu.memory_space<vmem>>, vector<8x4xf32>
    %c0_1 = arith.constant 0 : index
    %c0_2 = arith.constant 0 : index
    %1 = vector.load %arg2[%c0_1, %c0_2] : memref<8x32xf32, #tpu.memory_space<vmem>>, vector<8x32xf32>
    %c0_3 = arith.constant 0 : index
    %c0_4 = arith.constant 0 : index
    %2 = vector.load %arg3[%c0_3, %c0_4] : memref<8x3xi32, #tpu.memory_space<vmem>>, vector<8x3xi32>
    %3 = vector.extract_strided_slice %2 {offsets = [0, 0], sizes = [8, 1], strides = [1, 1]} : vector<8x3xi32> to vector<8x1xi32>
    %4 = vector.extract_strided_slice %2 {offsets = [0, 1], sizes = [8, 1], strides = [1, 1]} : vector<8x3xi32> to vector<8x1xi32>
    %5 = vector.extract_strided_slice %2 {offsets = [0, 2], sizes = [8, 1], strides = [1, 1]} : vector<8x3xi32> to vector<8x1xi32>
    %cst = arith.constant dense<0xFF800000> : vector<8xf32>
    %6 = vector.multi_reduction <maximumf>, %0, %cst [1] : vector<8x4xf32> to vector<8xf32>
    %7 = vector.shape_cast %6 : vector<8xf32> to vector<8x1xf32>
    %8 = vector.broadcast %7 : vector<8x1xf32> to vector<8x4xf32>
    %9 = arith.subf %0, %8 : vector<8x4xf32>
    %10 = math.exp %9 : vector<8x4xf32>
    %cst_5 = arith.constant dense<0.000000e+00> : vector<8xf32>
    %11 = vector.multi_reduction <add>, %10, %cst_5 [1] : vector<8x4xf32> to vector<8xf32>
    %12 = vector.shape_cast %11 : vector<8xf32> to vector<8x1xf32>
    %13 = math.log %12 : vector<8x1xf32>
    %14 = arith.addf %7, %13 : vector<8x1xf32>
    %15 = tpu.iota {dimensions = array<i32: 1>} : vector<8x4xi32>
    %16 = vector.broadcast %3 : vector<8x1xi32> to vector<8x4xi32>
    %17 = arith.cmpi eq, %15, %16 : vector<8x4xi32>
    %cst_6 = arith.constant 0.000000e+00 : f32
    %18 = vector.broadcast %cst_6 : f32 to vector<8x4xf32>
    %19 = arith.select %17, %0, %18 : vector<8x4xi1>, vector<8x4xf32>
    %cst_7 = arith.constant dense<0.000000e+00> : vector<8xf32>
    %20 = vector.multi_reduction <add>, %19, %cst_7 [1] : vector<8x4xf32> to vector<8xf32>
    %21 = vector.shape_cast %20 : vector<8xf32> to vector<8x1xf32>
    %22 = arith.subf %14, %21 : vector<8x1xf32>
    %cst_8 = arith.constant 0.000000e+00 : f32
    %23 = vector.broadcast %cst_8 : f32 to vector<8x1xf32>
    %c0_i32 = arith.constant 0 : i32
    %24 = vector.broadcast %c0_i32 : i32 to vector<8x1xi32>
    %25 = arith.cmpi eq, %3, %24 : vector<8x1xi32>
    %cst_9 = arith.constant 7.500000e-01 : f32
    %26 = vector.broadcast %cst_9 : f32 to vector<8x1xf32>
    %27 = arith.select %25, %26, %23 : vector<8x1xi1>, vector<8x1xf32>
    %c1_i32 = arith.constant 1 : i32
    %28 = vector.broadcast %c1_i32 : i32 to vector<8x1xi32>
    %29 = arith.cmpi eq, %3, %28 : vector<8x1xi32>
    %cst_10 = arith.constant 1.000000e+00 : f32
    %30 = vector.broadcast %cst_10 : f32 to vector<8x1xf32>
    %31 = arith.select %29, %30, %27 : vector<8x1xi1>, vector<8x1xf32>
    %c2_i32 = arith.constant 2 : i32
    %32 = vector.broadcast %c2_i32 : i32 to vector<8x1xi32>
    %33 = arith.cmpi eq, %3, %32 : vector<8x1xi32>
    %cst_11 = arith.constant 2.000000e+00 : f32
    %34 = vector.broadcast %cst_11 : f32 to vector<8x1xf32>
    %35 = arith.select %33, %34, %31 : vector<8x1xi1>, vector<8x1xf32>
    %c3_i32 = arith.constant 3 : i32
    %36 = vector.broadcast %c3_i32 : i32 to vector<8x1xi32>
    %37 = arith.cmpi eq, %3, %36 : vector<8x1xi32>
    %cst_12 = arith.constant 2.000000e+00 : f32
    %38 = vector.broadcast %cst_12 : f32 to vector<8x1xf32>
    %39 = arith.select %37, %38, %35 : vector<8x1xi1>, vector<8x1xf32>
    %40 = tpu.iota {dimensions = array<i32: 1>} : vector<8x32xi32>
    %c1_i32_13 = arith.constant 1 : i32
    %41 = vector.broadcast %c1_i32_13 : i32 to vector<8x32xi32>
    %42 = arith.andi %40, %41 : vector<8x32xi32>
    %c0_i32_14 = arith.constant 0 : i32
    %43 = vector.broadcast %c0_i32_14 : i32 to vector<8x32xi32>
    %44 = arith.cmpi eq, %42, %43 : vector<8x32xi32>
    %cst_15 = arith.constant 0xFF800000 : f32
    %45 = vector.broadcast %cst_15 : f32 to vector<8x32xf32>
    %46 = arith.select %44, %1, %45 : vector<8x32xi1>, vector<8x32xf32>
    %cst_16 = arith.constant dense<0xFF800000> : vector<8xf32>
    %47 = vector.multi_reduction <maximumf>, %46, %cst_16 [1] : vector<8x32xf32> to vector<8xf32>
    %48 = vector.shape_cast %47 : vector<8xf32> to vector<8x1xf32>
    %cst_17 = arith.constant 0xFF800000 : f32
    %49 = vector.broadcast %cst_17 : f32 to vector<8x32xf32>
    %50 = arith.select %44, %49, %1 : vector<8x32xi1>, vector<8x32xf32>
    %cst_18 = arith.constant dense<0xFF800000> : vector<8xf32>
    %51 = vector.multi_reduction <maximumf>, %50, %cst_18 [1] : vector<8x32xf32> to vector<8xf32>
    %52 = vector.shape_cast %51 : vector<8xf32> to vector<8x1xf32>
    %53 = vector.shape_cast %48 : vector<8x1xf32> to vector<8x1xf32>
    %54 = vector.broadcast %53 : vector<8x1xf32> to vector<8x32xf32>
    %55 = vector.shape_cast %52 : vector<8x1xf32> to vector<8x1xf32>
    %56 = vector.broadcast %55 : vector<8x1xf32> to vector<8x32xf32>
    %57 = arith.select %44, %54, %56 : vector<8x32xi1>, vector<8x32xf32>
    %58 = arith.subf %1, %57 : vector<8x32xf32>
    %59 = math.exp %58 : vector<8x32xf32>
    %cst_19 = arith.constant dense<0.000000e+00> : vector<8xf32>
    %60 = vector.multi_reduction <add>, %59, %cst_19 [1] : vector<8x32xf32> to vector<8xf32>
    %61 = vector.shape_cast %60 : vector<8xf32> to vector<8x1xf32>
    %cst_20 = arith.constant 0.000000e+00 : f32
    %62 = vector.broadcast %cst_20 : f32 to vector<8x32xf32>
    %63 = arith.select %44, %59, %62 : vector<8x32xi1>, vector<8x32xf32>
    %cst_21 = arith.constant dense<0.000000e+00> : vector<8xf32>
    %64 = vector.multi_reduction <add>, %63, %cst_21 [1] : vector<8x32xf32> to vector<8xf32>
    %65 = vector.shape_cast %64 : vector<8xf32> to vector<8x1xf32>
    %66 = arith.subf %61, %65 : vector<8x1xf32>
    %c2_i32_22 = arith.constant 2 : i32
    %67 = vector.broadcast %c2_i32_22 : i32 to vector<8x1xi32>
    %68 = arith.muli %67, %4 : vector<8x1xi32>
    %69 = vector.broadcast %68 : vector<8x1xi32> to vector<8x32xi32>
    %70 = arith.cmpi eq, %40, %69 : vector<8x32xi32>
    %cst_23 = arith.constant 0.000000e+00 : f32
    %71 = vector.broadcast %cst_23 : f32 to vector<8x32xf32>
    %72 = arith.select %70, %1, %71 : vector<8x32xi1>, vector<8x32xf32>
    %cst_24 = arith.constant dense<0.000000e+00> : vector<8xf32>
    %73 = vector.multi_reduction <add>, %72, %cst_24 [1] : vector<8x32xf32> to vector<8xf32>
    %74 = vector.shape_cast %73 : vector<8xf32> to vector<8x1xf32>
    %c2_i32_25 = arith.constant 2 : i32
    %75 = vector.broadcast %c2_i32_25 : i32 to vector<8x1xi32>
    %76 = arith.muli %75, %5 : vector<8x1xi32>
    %c1_i32_26 = arith.constant 1 : i32
    %77 = vector.broadcast %c1_i32_26 : i32 to vector<8x1xi32>
    %78 = arith.addi %76, %77 : vector<8x1xi32>
    %79 = vector.broadcast %78 : vector<8x1xi32> to vector<8x32xi32>
    %80 = arith.cmpi eq, %40, %79 : vector<8x32xi32>
    %cst_27 = arith.constant 0.000000e+00 : f32
    %81 = vector.broadcast %cst_27 : f32 to vector<8x32xf32>
    %82 = arith.select %80, %1, %81 : vector<8x32xi1>, vector<8x32xf32>
    %cst_28 = arith.constant dense<0.000000e+00> : vector<8xf32>
    %83 = vector.multi_reduction <add>, %82, %cst_28 [1] : vector<8x32xf32> to vector<8xf32>
    %84 = vector.shape_cast %83 : vector<8xf32> to vector<8x1xf32>
    %85 = math.log %65 : vector<8x1xf32>
    %86 = arith.addf %48, %85 : vector<8x1xf32>
    %87 = arith.subf %86, %74 : vector<8x1xf32>
    %88 = math.log %66 : vector<8x1xf32>
    %89 = arith.addf %52, %88 : vector<8x1xf32>
    %90 = arith.subf %89, %84 : vector<8x1xf32>
    %c1_i32_29 = arith.constant 1 : i32
    %91 = vector.broadcast %c1_i32_29 : i32 to vector<8x1xi32>
    %92 = arith.cmpi eq, %3, %91 : vector<8x1xi32>
    %93 = arith.extui %92 : vector<8x1xi1> to vector<8x1xi32>
    %94 = arith.sitofp %93 : vector<8x1xi32> to vector<8x1xf32>
    %95 = arith.mulf %39, %22 : vector<8x1xf32>
    %96 = vector.shape_cast %95 : vector<8x1xf32> to vector<1x8x1xf32>
    %cst_30 = arith.constant dense<0.000000e+00> : vector<1xf32>
    %97 = vector.multi_reduction <add>, %96, %cst_30 [1, 2] : vector<1x8x1xf32> to vector<1xf32>
    %98 = vector.shape_cast %97 : vector<1xf32> to vector<1x1x1xf32>
    %99 = vector.extract %98[0, 0, 0] : f32 from vector<1x1x1xf32>
    %100 = vector.broadcast %99 : f32 to vector<1x1xf32>
    %101 = vector.shape_cast %39 : vector<8x1xf32> to vector<1x8x1xf32>
    %cst_31 = arith.constant dense<0.000000e+00> : vector<1xf32>
    %102 = vector.multi_reduction <add>, %101, %cst_31 [1, 2] : vector<1x8x1xf32> to vector<1xf32>
    %103 = vector.shape_cast %102 : vector<1xf32> to vector<1x1x1xf32>
    %104 = vector.extract %103[0, 0, 0] : f32 from vector<1x1x1xf32>
    %105 = vector.broadcast %104 : f32 to vector<1x1xf32>
    %106 = arith.addf %87, %90 : vector<8x1xf32>
    %107 = arith.mulf %106, %94 : vector<8x1xf32>
    %108 = vector.shape_cast %107 : vector<8x1xf32> to vector<1x8x1xf32>
    %cst_32 = arith.constant dense<0.000000e+00> : vector<1xf32>
    %109 = vector.multi_reduction <add>, %108, %cst_32 [1, 2] : vector<1x8x1xf32> to vector<1xf32>
    %110 = vector.shape_cast %109 : vector<1xf32> to vector<1x1x1xf32>
    %111 = vector.extract %110[0, 0, 0] : f32 from vector<1x1x1xf32>
    %112 = vector.broadcast %111 : f32 to vector<1x1xf32>
    %113 = vector.shape_cast %94 : vector<8x1xf32> to vector<1x8x1xf32>
    %cst_33 = arith.constant dense<0.000000e+00> : vector<1xf32>
    %114 = vector.multi_reduction <add>, %113, %cst_33 [1, 2] : vector<1x8x1xf32> to vector<1xf32>
    %115 = vector.shape_cast %114 : vector<1xf32> to vector<1x1x1xf32>
    %116 = vector.extract %115[0, 0, 0] : f32 from vector<1x1x1xf32>
    %117 = vector.broadcast %116 : f32 to vector<1x1xf32>
    %118 = tpu.iota {dimensions = array<i32: 1>} : vector<1x8x128xi32>
    %c0_i32_34 = arith.constant 0 : i32
    %119 = vector.broadcast %c0_i32_34 : i32 to vector<1x8x128xi32>
    %120 = arith.cmpi eq, %118, %119 : vector<1x8x128xi32>
    %cst_35 = arith.constant 0.000000e+00 : f32
    %121 = vector.shape_cast %100 : vector<1x1xf32> to vector<1x1x1xf32>
    %122 = vector.broadcast %121 : vector<1x1x1xf32> to vector<1x8x128xf32>
    %123 = vector.broadcast %cst_35 : f32 to vector<1x8x128xf32>
    %124 = arith.select %120, %122, %123 : vector<1x8x128xi1>, vector<1x8x128xf32>
    %c1_i32_36 = arith.constant 1 : i32
    %125 = vector.broadcast %c1_i32_36 : i32 to vector<1x8x128xi32>
    %126 = arith.cmpi eq, %118, %125 : vector<1x8x128xi32>
    %cst_37 = arith.constant 0.000000e+00 : f32
    %127 = vector.shape_cast %105 : vector<1x1xf32> to vector<1x1x1xf32>
    %128 = vector.broadcast %127 : vector<1x1x1xf32> to vector<1x8x128xf32>
    %129 = vector.broadcast %cst_37 : f32 to vector<1x8x128xf32>
    %130 = arith.select %126, %128, %129 : vector<1x8x128xi1>, vector<1x8x128xf32>
    %131 = arith.addf %124, %130 : vector<1x8x128xf32>
    %c2_i32_38 = arith.constant 2 : i32
    %132 = vector.broadcast %c2_i32_38 : i32 to vector<1x8x128xi32>
    %133 = arith.cmpi eq, %118, %132 : vector<1x8x128xi32>
    %cst_39 = arith.constant 0.000000e+00 : f32
    %134 = vector.shape_cast %112 : vector<1x1xf32> to vector<1x1x1xf32>
    %135 = vector.broadcast %134 : vector<1x1x1xf32> to vector<1x8x128xf32>
    %136 = vector.broadcast %cst_39 : f32 to vector<1x8x128xf32>
    %137 = arith.select %133, %135, %136 : vector<1x8x128xi1>, vector<1x8x128xf32>
    %138 = arith.addf %131, %137 : vector<1x8x128xf32>
    %c3_i32_40 = arith.constant 3 : i32
    %139 = vector.broadcast %c3_i32_40 : i32 to vector<1x8x128xi32>
    %140 = arith.cmpi eq, %118, %139 : vector<1x8x128xi32>
    %cst_41 = arith.constant 0.000000e+00 : f32
    %141 = vector.shape_cast %117 : vector<1x1xf32> to vector<1x1x1xf32>
    %142 = vector.broadcast %141 : vector<1x1x1xf32> to vector<1x8x128xf32>
    %143 = vector.broadcast %cst_41 : f32 to vector<1x8x128xf32>
    %144 = arith.select %140, %142, %143 : vector<1x8x128xi1>, vector<1x8x128xf32>
    %145 = arith.addf %138, %144 : vector<1x8x128xf32>
    %c0_42 = arith.constant 0 : index
    %c0_43 = arith.constant 0 : index
    %c0_44 = arith.constant 0 : index
    %146 = vector.load %arg4[%c0_42, %c0_43, %c0_44] : memref<1x8x128xf32, #tpu.memory_space<vmem>>, vector<1x8x128xf32>
    tpu.vector_store %arg4[%c0_42, %c0_43, %c0_44], %145 {strides = array<i32>} : memref<1x8x128xf32, #tpu.memory_space<vmem>>, vector<1x8x128xf32>,
    return
  }
  func.func @transform_0(%arg0: i32) -> (i32, i32) {
    %c0_i32 = arith.constant 0 : i32
    %c0_i32_0 = arith.constant 0 : i32
    return %arg0, %c0_i32 : i32, i32
  }
  func.func @transform_1(%arg0: i32) -> (i32, i32) {
    %c0_i32 = arith.constant 0 : i32
    %c0_i32_0 = arith.constant 0 : i32
    return %arg0, %c0_i32 : i32, i32
  }
  func.func @transform_2(%arg0: i32) -> (i32, i32) {
    %c0_i32 = arith.constant 0 : i32
    %c0_i32_0 = arith.constant 0 : i32
    return %arg0, %c0_i32 : i32, i32
  }
  func.func @transform_3(%arg0: i32) -> (i32, i32, i32) {
    %c0_i32 = arith.constant 0 : i32
    %c0_i32_0 = arith.constant 0 : i32
    %c0_i32_1 = arith.constant 0 : i32
    return %arg0, %c0_i32, %c0_i32_0 : i32, i32, i32
  }
}

</mosaic_0001>

<llo_original>
// kernel: tpu_custom_call.1
$region0: #{tpu_custom_call.1}
  #allocation0 [shape = 'u32[]', space=smem, size = 0x4, offset = 0x4, fixed_abs, tag = 'smem constant byte address 0x4 - core index']
  #allocation1 [shape = 'u32[72,128]{1,0:T(1,128)}', space=vmem, size = 0x9000, scoped, tag = 'internal scratch']
  %s0 = inlined_call_operand.vmem [shape: f32[8,4], index: 0, kind: input, shape index: {}]
  %s1 = inlined_call_operand.vmem [shape: f32[8,32], index: 1, kind: input, shape index: {}]
  %s2 = inlined_call_operand.vmem [shape: s32[8,3], index: 2, kind: input, shape index: {}]
  %s3 = inlined_call_operand.hbm [shape: f32[1,8,128], index: 3, kind: output, shape index: {}]
  %s4 = sld [smem:[#allocation0]]
  $region22: #{tpu_custom_call.1} parent=0
    _
  %s6 = ssub.s32 1, %s4
  %s7 = scalar_select 0, %s6, %s4
  $region1: #{tpu_custom_call.1} parent=0
    #allocation2 [shape = 'u8[4096]{0}', space=vmem, size = 0x1000, scoped, tag = 'output window, operand 0, single buffered']
    #allocation3 [shape = 's32[1]{0}', space=sflag, size = 0x4, scoped, tag = 'scoped memory for tpu_custom_call.1']
    %8 = vsyncpa [#allocation3], 0
    // Predicated region
    $region2: #{tpu_custom_call.1} parent=1 // pred_check
      _
    $region3: #{tpu_custom_call.1} parent=1 // pred_check_branch
      %10 = sbr.rel (0) target = $region5
    $region4: #{tpu_custom_call.1} parent=1 // pred_region
      _
    $region5: #{tpu_custom_call.1} parent=1 // pred_fallthru
      _
    // Predicated region
    $region6: #{tpu_custom_call.1} parent=1 // pred_check
      _
    $region7: #{tpu_custom_call.1} parent=1 // pred_check_branch
      %12 = sbr.rel (0) target = $region9
    $region8: #{tpu_custom_call.1} parent=1 // pred_region
      _
    $region9: #{tpu_custom_call.1} parent=1 // pred_fallthru
      _
    // Predicated region
    $region10: #{tpu_custom_call.1} parent=1 // pred_check
      _
    $region11: #{tpu_custom_call.1} parent=1 // pred_check_branch
      %14 = sbr.rel (0) target = $region13
    $region12: #{tpu_custom_call.1} parent=1 // pred_region
      _
    $region13: #{tpu_custom_call.1} parent=1 // pred_fallthru
      _
    %v15 = vld [vmem:[%s0] sm:$0xff]
    %v16 = vld [vmem:[%s1] sm:$0xff]
    %v17 = vld [vmem:[%s2] sm:$0xff]
    %vm18 = vcmask 31744
    %v19 = vsel %vm18, %v15, -inf
    %20 = vmax.xlane.f32.xlu0 %v19
    %v21 = vpop.xlane.xlu0 %20
    %v22 = vsub.f32 %v15, %v21
    %v23 = vmul.f32 %v22, 1.442695
    %v24 = vpow.pop %v23
    %v25 = vsel %vm18, %v24, 0.0
    %26 = vadd.xlane.f32.xlu0 %v25
    %v27 = vpop.xlane.xlu0 %26
    %v28 = vlog2.pop %v27
    %v29 = vmul.f32 %v28, 0.6931472
    %v30 = vadd.f32 %v21, %v29
    %v31 = vlaneseq
    %v32 = vand.u32 %v31, 127
    %33 = vset.pattern.permute.xlu0 0
    %34 = vperm.xlu0 %33, %v17
    %v35 = vpop.permute.xlu0 %34
    %vm36 = vcmp.eq.s32.totalorder %v32, %v35
    %v37 = vsel %vm36, %v15, 0.0
    %v38 = vsel %vm18, %v37, 0.0
    %39 = vadd.xlane.f32.xlu0 %v38
    %v40 = vpop.xlane.xlu0 %39
    %v41 = vsub.f32 %v30, %v40
    %vm42 = vcmp.eq.s32.totalorder %v17, 0
    %v43 = vsel %vm42, 0.75, 0.0
    %vm44 = vcmp.eq.s32.totalorder %v17, 1
    %v45 = vsel %vm44, 1.0, %v43
    %vm46 = vcmp.eq.s32.totalorder %v17, 2
    %v47 = vsel %vm46, 2.0, %v45
    %vm48 = vcmp.eq.s32.totalorder %v17, 3
    %v49 = vsel %vm48, 2.0, %v47
    %v50 = vand.u32 %v32, 1
    %vm51 = vcmp.eq.s32.totalorder %v50, 0
    %v52 = vsel %vm51, %v16, -inf
    %vm53 = vcmask 261120
    %v54 = vsel %vm53, %v52, -inf
    %55 = vmax.xlane.f32.xlu0 %v54
    %v56 = vpop.xlane.xlu0 %55
    %v57 = vsel %vm51, -inf, %v16
    %v58 = vsel %vm53, %v57, -inf
    %59 = vmax.xlane.f32.xlu0 %v58
    %v60 = vpop.xlane.xlu0 %59
    %v61 = vsel %vm51, %v56, %v60
    %v62 = vsub.f32 %v16, %v61
    %v63 = vmul.f32 %v62, 1.442695
    %v64 = vpow.pop %v63
    %v65 = vsel %vm53, %v64, 0.0
    %66 = vadd.xlane.f32.xlu0 %v65
    %v67 = vpop.xlane.xlu0 %66
    %v68 = vsel %vm51, %v64, 0.0
    %v69 = vsel %vm53, %v68, 0.0
    %70 = vadd.xlane.f32.xlu0 %v69
    %v71 = vpop.xlane.xlu0 %70
    %v72 = vsub.f32 %v67, %v71
    %v73 = vmul.u32 %v17, 2
    %74 = vset.pattern.permute.xlu0 1
    %75 = vperm.xlu0 %74, %v73
    %v76 = vpop.permute.xlu0 %75
    %vm77 = vcmp.eq.s32.totalorder %v32, %v76
    %v78 = vsel %vm77, %v16, 0.0
    %v79 = vsel %vm53, %v78, 0.0
    %80 = vadd.xlane.f32.xlu0 %v79
    %v81 = vpop.xlane.xlu0 %80
    %v82 = vadd.s32 %v73, 1
    %83 = vset.pattern.permute.xlu0 2
    %84 = vperm.xlu0 %83, %v82
    %v85 = vpop.permute.xlu0 %84
    %vm86 = vcmp.eq.s32.totalorder %v32, %v85
    %v87 = vsel %vm86, %v16, 0.0
    %v88 = vsel %vm53, %v87, 0.0
    %89 = vadd.xlane.f32.xlu0 %v88
    %v90 = vpop.xlane.xlu0 %89
    %v91 = vlog2.pop %v71
    %v92 = vmul.f32 %v91, 0.6931472
    %v93 = vadd.f32 %v56, %v92
    %v94 = vsub.f32 %v93, %v81
    %v95 = vlog2.pop %v72
    %v96 = vmul.f32 %v95, 0.6931472
    %v97 = vadd.f32 %v60, %v96
    %v98 = vsub.f32 %v97, %v90
    %v99 = vsel %vm44, 1, 0
    %v100 = vcvt.s32.f32 %v99
    %v101 = vmul.f32 %v49, %v41
    %vm102 = vcmask 7168
    %v103 = vsel %vm102, %v101, 0.0
    %104 = vadd.xlane.f32.xlu0 %v103
    %v105 = vpop.xlane.xlu0 %104
    %v106 = vrot.slane %v105, 4
    %v107 = vadd.f32 %v105, %v106
    %v108 = vrot.slane %v107, 2
    %v109 = vadd.f32 %v107, %v108
    %v110 = vrot.slane %v109, 1
    %v111 = vadd.f32 %v109, %v110
    %s112 = vtos %v111
    %v113 = vsel %vm102, %v49, 0.0
    %114 = vadd.xlane.f32.xlu0 %v113
    %v115 = vpop.xlane.xlu0 %114
    %v116 = vrot.slane %v115, 4
    %v117 = vadd.f32 %v115, %v116
    %v118 = vrot.slane %v117, 2
    %v119 = vadd.f32 %v117, %v118
    %v120 = vrot.slane %v119, 1
    %v121 = vadd.f32 %v119, %v120
    %s122 = vtos %v121
    %v123 = vadd.f32 %v94, %v98
    %v124 = vmul.f32 %v123, %v100
    %v125 = vsel %vm102, %v124, 0.0
    %126 = vadd.xlane.f32.xlu0 %v125
    %v127 = vpop.xlane.xlu0 %126
    %v128 = vrot.slane %v127, 4
    %v129 = vadd.f32 %v127, %v128
    %v130 = vrot.slane %v129, 2
    %v131 = vadd.f32 %v129, %v130
    %v132 = vrot.slane %v131, 1
    %v133 = vadd.f32 %v131, %v132
    %s134 = vtos %v133
    %v135 = vsel %vm102, %v100, 0.0
    %136 = vadd.xlane.f32.xlu0 %v135
    %v137 = vpop.xlane.xlu0 %136
    %v138 = vrot.slane %v137, 4
    %v139 = vadd.f32 %v137, %v138
    %v140 = vrot.slane %v139, 2
    %v141 = vadd.f32 %v139, %v140
    %v142 = vrot.slane %v141, 1
    %v143 = vadd.f32 %v141, %v142
    %s144 = vtos %v143
    %v145 = vlaneseq
    %v146 = vshrl.u32 %v145, 7
    %vm147 = vcmp.eq.s32.totalorder %v146, 0
    %v148 = vstv %s112
    %v149 = vsel %vm147, %v148, 0.0
    %vm150 = vcmp.eq.s32.totalorder %v146, 1
    %v151 = vstv %s122
    %v152 = vsel %vm150, %v151, 0.0
    %v153 = vadd.f32 %v149, %v152
    %vm154 = vcmp.eq.s32.totalorder %v146, 2
    %v155 = vstv %s134
    %v156 = vsel %vm154, %v155, 0.0
    %v157 = vadd.f32 %v153, %v156
    %vm158 = vcmp.eq.s32.totalorder %v146, 3
    %v159 = vstv %s144
    %v160 = vsel %vm158, %v159, 0.0
    %v161 = vadd.f32 %v157, %v160
    %162 = vst [vmem:[#allocation2] sm:$0xff] %v161
    // Predicated region
    $region14: #{tpu_custom_call.1} parent=1 // pred_check
      _
    $region15: #{tpu_custom_call.1} parent=1 // pred_check_branch
      %164 = sbr.rel (0) target = $region17
    $region16: #{tpu_custom_call.1} parent=1 // pred_region
      %166 = vsyncadd [#allocation3], 0
      %s168 = sshll.u32 [#allocation2], 4
      %s169 = int_to_ptr.vmem [resolvable:$true] %s168
      %s170 = sshll.u32 %s3, 4
      %s171 = int_to_ptr.hbm [resolvable:$true] %s170
      %173 = dma.vmem_to_hbm [thread:$0]  %s169, 128, %s171, [#allocation3]
    $region17: #{tpu_custom_call.1} parent=1 // pred_fallthru
      _
    // Predicated region
    $region18: #{tpu_custom_call.1} parent=1 // pred_check
      _
    $region19: #{tpu_custom_call.1} parent=1 // pred_check_branch
      %175 = sbr.rel (0) target = $region21
    $region20: #{tpu_custom_call.1} parent=1 // pred_region
      %177 = dma.done [#allocation3], 128
    $region21: #{tpu_custom_call.1} parent=1 // pred_fallthru
      _
    %178 = vsyncpa [#allocation3], 1

</llo_original>
